<compile_context>
chip_gen: v7x
topology: tpu7x:2x2x1
jax: 0.10.0
libtpu: 0.0.40
codegen_flags: <defaults>
</compile_context>

<pallas_src>
import jax
import jax.numpy as jnp
from jax.experimental import pallas as pl
from jax.experimental.pallas import tpu as pltpu

_LANE = 128      # lane width (last-dim physical granularity in VMEM)
_SUBLANE = 8     # f32 sublane granularity for the edge tile


def _round_up(x, m):
    return ((x + m - 1) // m) * m


def _edge_encoder_kernel(x_ref, w_ref, b_ref, o_ref):
    # MXU matmul with f32 accumulation + VPU bias broadcast, all in VMEM.
    acc = jnp.dot(x_ref[...], w_ref[...], preferred_element_type=jnp.float32)
    acc = acc + b_ref[...]            # broadcast [1, tco] over [te, tco]
    o_ref[...] = acc.astype(o_ref.dtype)


def prepare_params(weight, bias):
    """One-time parameter prep (hoisted out of the per-call hot path).

    nn.Linear stores weight as [Cout, Cin]; transpose once to [Cin, Cout] so
    the kernel output is lane-major in Cout.  No lane padding: padding a small
    cout to 128 multiplies HBM write traffic on a mem-bound kernel and forces
    an unpad copy afterwards; a masked vst is far cheaper.
    """
    w_t = jnp.asarray(weight).T                       # [Cin, Cout]
    b2d = jnp.asarray(bias).reshape(1, -1)            # [1, Cout]
    return w_t, b2d


def edge_encoder(x, w_t, b2d, *, max_tile_e=16384, vmem_budget_bytes=16 << 20):
    """y = x @ W.T + b  (W is the nn.Linear weight; w_t/b2d from prepare_params)."""
    E, Cin = x.shape
    Cin_w, Cout = w_t.shape
    assert Cin == Cin_w, "in_channels mismatch between x and prepared weight"
    assert b2d.shape == (1, Cout)

    itemsize = jnp.dtype(x.dtype).itemsize
    out_itemsize = itemsize                      # output kept in x.dtype

    cin_lanes = _round_up(Cin, _LANE)            # physical lane footprint of x rows
    cin_sub = _round_up(Cin, _SUBLANE)           # sublane footprint of weight rows

    # --- choose Cout tile (usually the full Cout) ---------------------------
    # Weight + bias stay VMEM-resident per grid column; BlockSpec pipeline
    # double-buffers them, so count them 2x.  If that alone would eat more
    # than half the budget, tile Cout in 128-lane multiples (keeps stores
    # lane-dense and the index_map constant along the edge axis).
    def _param_bytes(tco):
        tco_l = _round_up(tco, _LANE)
        return 2 * (cin_sub * tco_l + _SUBLANE * tco_l) * itemsize

    if Cout <= _LANE or _param_bytes(Cout) <= vmem_budget_bytes // 2:
        tco = Cout
    else:
        max_lanes = (vmem_budget_bytes // 2) // (2 * (cin_sub + _SUBLANE) * itemsize)
        tco = max(_LANE, (max_lanes // _LANE) * _LANE)
        tco = min(tco, _round_up(Cout, _LANE))

    # --- choose edge tile te: big (multi-MiB) steps to amortize ~0.35us/step --
    def _tile_bytes(te):
        tco_l = _round_up(tco, _LANE)
        return (2 * te * cin_lanes * itemsize        # x tile, double-buffered, lane-padded
                + 2 * te * tco_l * out_itemsize      # out tile, double-buffered, lane-padded
                + _param_bytes(tco))                 # weight + bias (double-buffered)

    te = min(max_tile_e, E)
    if te < E:
        te = max(_SUBLANE, (te // _SUBLANE) * _SUBLANE)   # sublane-aligned partial tiles
    while te > _SUBLANE and _tile_bytes(te) > vmem_budget_bytes:
        te = max(_SUBLANE, ((te // 2) // _SUBLANE) * _SUBLANE)

    grid = (pl.cdiv(E, te), pl.cdiv(Cout, tco))

    cost = pl.CostEstimate(
        flops=2 * E * Cin * Cout,                    # true cout, no padding
        transcendentals=0,
        bytes_accessed=itemsize * (E * Cin + Cin * Cout + Cout)
        + out_itemsize * E * Cout,
    )

    return pl.pallas_call(
        _edge_encoder_kernel,
        out_shape=jax.ShapeDtypeStruct((E, Cout), x.dtype),
        grid_spec=pltpu.PrefetchScalarGridSpec(
            num_scalar_prefetch=0,
            grid=grid,
            in_specs=[
                # streaming edge tile
                pl.BlockSpec((te, Cin), lambda i, j: (i, 0)),
                # weight / bias: constant along the edge axis -> stay resident
                pl.BlockSpec((Cin, tco), lambda i, j: (0, j)),
                pl.BlockSpec((1, tco), lambda i, j: (0, j)),
            ],
            out_specs=pl.BlockSpec((te, tco), lambda i, j: (i, j)),
        ),
        compiler_params=pltpu.CompilerParams(
            # No reduction axis: both grid axes are independent.
            # TODO(synk): on v7x, CORE_PARALLEL on the edge axis would force an
            # explicit split across the two TensorCores if "parallel" doesn't.
            dimension_semantics=("parallel", "parallel"),
            # Explicit scoped-VMEM limit: above v5e's 16 MiB default, equal to
            # the v6e/v7x default, well under v7x's 64 MiB physical.
            vmem_limit_bytes=32 << 20,
        ),
        cost_estimate=cost,
    )(x, w_t, b2d)


def init_linear_params(key, in_channels, out_channels):
    """Deterministic init matching nn.Linear's default (uniform +-1/sqrt(fan_in))."""
    k_w, k_b = jax.random.split(key)
    bound = 1.0 / (in_channels ** 0.5)
    weight = jax.random.uniform(
        k_w, (out_channels, in_channels), jnp.float32, minval=-bound, maxval=bound
    )
    bias = jax.random.uniform(
        k_b, (out_channels,), jnp.float32, minval=-bound, maxval=bound
    )
    return weight, bias


if __name__ == "__main__":
    key = jax.random.PRNGKey(0)
    k_x, k_p = jax.random.split(key)

    num_edges = 16
    in_channels = 8
    out_channels = 32

    x = jax.random.normal(k_x, (num_edges, in_channels), jnp.float32)
    weight, bias = init_linear_params(k_p, in_channels, out_channels)

    # One-time (per-parameter) prep, hoisted out of the hot path.
    w_t, b2d = prepare_params(weight, bias)

    y = edge_encoder(x, w_t, b2d)
    jax.block_until_ready(y)

    # Reference check against plain JAX (same math as nn.Linear forward).
    y_ref = x @ weight.T + bias
    assert y.shape == (num_edges, out_channels)
    assert jnp.allclose(y, y_ref, atol=1e-5, rtol=1e-5)

    print("KERNEL_OK")
</pallas_src>

<mosaic_0001>
module attributes {stable_mosaic.version = 11 : i64} {
  func.func @_edge_encoder_kernel(%arg0: i32, %arg1: i32, %arg2: memref<16x8xf32, #tpu.memory_space<vmem>>, %arg3: memref<8x32xf32, #tpu.memory_space<vmem>>, %arg4: memref<1x32xf32, #tpu.memory_space<vmem>>, %arg5: memref<16x32xf32, #tpu.memory_space<vmem>>) attributes {dimension_semantics = [#tpu.dimension_semantics<parallel>, #tpu.dimension_semantics<parallel>], iteration_bounds = array<i64: 1, 1>, scalar_prefetch = 0 : i64, scratch_operands = 0 : i64, tpu.core_type = #tpu.core_type<tc>, window_params = [{transform_indices = @transform_0, window_bounds = array<i64: 16, 8>}, {transform_indices = @transform_1, window_bounds = array<i64: 8, 32>}, {transform_indices = @transform_2, window_bounds = array<i64: 1, 32>}, {transform_indices = @transform_3, window_bounds = array<i64: 16, 32>}]} {
    %c0 = arith.constant 0 : index
    %c0_0 = arith.constant 0 : index
    %0 = vector.load %arg2[%c0, %c0_0] : memref<16x8xf32, #tpu.memory_space<vmem>>, vector<16x8xf32>
    %c0_1 = arith.constant 0 : index
    %c0_2 = arith.constant 0 : index
    %1 = vector.load %arg3[%c0_1, %c0_2] : memref<8x32xf32, #tpu.memory_space<vmem>>, vector<8x32xf32>
    %cst = arith.constant dense<0.000000e+00> : vector<16x32xf32>
    %2 = tpu.matmul %0, %1, %cst {dimension_numbers = #tpu.dot_dimension_numbers<[1], [0], [0], [1], [0, 0, 1, 1], [], []>} : vector<16x8xf32>, vector<8x32xf32>, vector<16x32xf32> -> vector<16x32xf32>
    %c0_3 = arith.constant 0 : index
    %c0_4 = arith.constant 0 : index
    %3 = vector.load %arg4[%c0_3, %c0_4] : memref<1x32xf32, #tpu.memory_space<vmem>>, vector<1x32xf32>
    %4 = vector.broadcast %3 : vector<1x32xf32> to vector<16x32xf32>
    %5 = arith.addf %2, %4 : vector<16x32xf32>
    %c0_5 = arith.constant 0 : index
    %c0_6 = arith.constant 0 : index
    %6 = vector.load %arg5[%c0_5, %c0_6] : memref<16x32xf32, #tpu.memory_space<vmem>>, vector<16x32xf32>
    tpu.vector_store %arg5[%c0_5, %c0_6], %5 {strides = array<i32>} : memref<16x32xf32, #tpu.memory_space<vmem>>, vector<16x32xf32>,
    return
  }
  func.func @transform_0(%arg0: i32, %arg1: i32) -> (i32, i32) {
    %c0_i32 = arith.constant 0 : i32
    %c0_i32_0 = arith.constant 0 : i32
    return %arg0, %c0_i32 : i32, i32
  }
  func.func @transform_1(%arg0: i32, %arg1: i32) -> (i32, i32) {
    %c0_i32 = arith.constant 0 : i32
    %c0_i32_0 = arith.constant 0 : i32
    return %c0_i32, %arg1 : i32, i32
  }
  func.func @transform_2(%arg0: i32, %arg1: i32) -> (i32, i32) {
    %c0_i32 = arith.constant 0 : i32
    %c0_i32_0 = arith.constant 0 : i32
    return %c0_i32, %arg1 : i32, i32
  }
  func.func @transform_3(%arg0: i32, %arg1: i32) -> (i32, i32) {
    %c0_i32 = arith.constant 0 : i32
    return %arg0, %arg1 : i32, i32
  }
}

</mosaic_0001>

<llo_original>
// kernel: tpu_custom_call.1
$region0: #{tpu_custom_call.1}
  #allocation0 [shape = 'u32[]', space=smem, size = 0x4, offset = 0x4, fixed_abs, tag = 'smem constant byte address 0x4 - core index']
  #allocation1 [shape = 'u32[144,128]{1,0:T(1,128)}', space=vmem, size = 0x12000, scoped, tag = 'internal scratch']
  %s0 = inlined_call_operand.vmem [shape: f32[16,8], index: 0, kind: input, shape index: {}]
  %s1 = inlined_call_operand.vmem [shape: f32[8,32], index: 1, kind: input, shape index: {}]
  %s2 = inlined_call_operand.vmem [shape: f32[1,32], index: 2, kind: input, shape index: {}]
  %s3 = inlined_call_operand.hbm [shape: f32[16,32], index: 3, kind: output, shape index: {}]
  %s4 = sld [smem:[#allocation0]]
  $region22: #{tpu_custom_call.1} parent=0
    _
  %s6 = ssub.s32 1, %s4
  %s7 = scalar_select 0, %s6, %s4
  $region1: #{tpu_custom_call.1} parent=0
    #allocation2 [shape = 'u8[8192]{0}', space=vmem, size = 0x2000, scoped, tag = 'output window, operand 0, single buffered']
    #allocation3 [shape = 's32[1]{0}', space=sflag, size = 0x4, scoped, tag = 'scoped memory for tpu_custom_call.1']
    %8 = vsyncpa [#allocation3], 0
    // Predicated region
    $region2: #{tpu_custom_call.1} parent=1 // pred_check
      _
    $region3: #{tpu_custom_call.1} parent=1 // pred_check_branch
      %10 = sbr.rel (0) target = $region5
    $region4: #{tpu_custom_call.1} parent=1 // pred_region
      _
    $region5: #{tpu_custom_call.1} parent=1 // pred_fallthru
      _
    // Predicated region
    $region6: #{tpu_custom_call.1} parent=1 // pred_check
      _
    $region7: #{tpu_custom_call.1} parent=1 // pred_check_branch
      %12 = sbr.rel (0) target = $region9
    $region8: #{tpu_custom_call.1} parent=1 // pred_region
      _
    $region9: #{tpu_custom_call.1} parent=1 // pred_fallthru
      _
    // Predicated region
    $region10: #{tpu_custom_call.1} parent=1 // pred_check
      _
    $region11: #{tpu_custom_call.1} parent=1 // pred_check_branch
      %14 = sbr.rel (0) target = $region13
    $region12: #{tpu_custom_call.1} parent=1 // pred_region
      _
    $region13: #{tpu_custom_call.1} parent=1 // pred_fallthru
      _
    %v15 = vld [vmem:[%s0] sm:$0xff]
    %v16 = vld [vmem:[%s0 + $0x8] sm:$0xff]
    %v17 = vld [vmem:[%s1] sm:$0xff]
    %v18 = vld [vmem:[%s2] sm:$0x1]
    %v20 = vlaneseq
    %v21 = vshrl.u32 %v20, 7
    %v22 = vsub.s32 0, %v21
    %v23 = vrot.slane %v18, %v22
    %vm25 = vcmask 64512
    %v27 = vsel %vm25, %v15, 0
    %v30 = vsel %vm25, %v16, 0
    %32 = vmatprep.subr.mxu0 0.0
    %33 = vmatpush1.msra.mxu0 %v17
    %34 = vmatprep.subr.mxu0 0.0
    %35 = vmatpush1.msra.mxu0 0.0
    %36 = vmatprep.subr.mxu0 0.0
    %37 = vmatpush1.msra.mxu0 0.0
    %38 = vmatprep.subr.mxu0 0.0
    %39 = vmatpush1.msra.mxu0 0.0
    %40 = vmatprep.subr.mxu0 0.0
    %41 = vmatpush1.msra.mxu0 0.0
    %42 = vmatprep.subr.mxu0 0.0
    %43 = vmatpush1.msra.mxu0 0.0
    %44 = vmatprep.subr.mxu0 0.0
    %45 = vmatpush1.msra.mxu0 0.0
    %46 = vmatprep.subr.mxu0 0.0
    %47 = vmatpush1.msra.mxu0 0.0
    %48 = vmatprep.subr.mxu0 0.0
    %49 = vmatpush1.msra.mxu0 0.0
    %50 = vmatprep.subr.mxu0 0.0
    %51 = vmatpush1.msra.mxu0 0.0
    %52 = vmatprep.subr.mxu0 0.0
    %53 = vmatpush1.msra.mxu0 0.0
    %54 = vmatprep.subr.mxu0 0.0
    %55 = vmatpush1.msra.mxu0 0.0
    %56 = vmatprep.subr.mxu0 0.0
    %57 = vmatpush1.msra.mxu0 0.0
    %58 = vmatprep.subr.mxu0 0.0
    %59 = vmatpush1.msra.mxu0 0.0
    %60 = vmatprep.subr.mxu0 0.0
    %61 = vmatpush1.msra.mxu0 0.0
    %62 = vmatprep.subr.mxu0 0.0
    %63 = vmatpush1.msra.mxu0 0.0
    %64 = vmatprep.subr.mxu0 0.0
    %65 = vmatpush1.msra.mxu0 0.0
    %66 = vmatprep.subr.mxu0 0.0
    %67 = vmatpush1.msra.mxu0 0.0
    %68 = vmatprep.subr.mxu0 0.0
    %69 = vmatpush1.msra.mxu0 0.0
    %70 = vmatprep.subr.mxu0 0.0
    %71 = vmatpush1.msra.mxu0 0.0
    %72 = vmatprep.subr.mxu0 0.0
    %73 = vmatpush1.msra.mxu0 0.0
    %74 = vmatprep.subr.mxu0 0.0
    %75 = vmatpush1.msra.mxu0 0.0
    %76 = vmatprep.subr.mxu0 0.0
    %77 = vmatpush1.msra.mxu0 0.0
    %78 = vmatprep.subr.mxu0 0.0
    %79 = vmatpush1.msra.mxu0 0.0
    %80 = vmatprep.subr.mxu0 0.0
    %81 = vmatpush1.msra.mxu0 0.0
    %82 = vmatprep.subr.mxu0 0.0
    %83 = vmatpush1.msra.mxu0 0.0
    %84 = vmatprep.subr.mxu0 0.0
    %85 = vmatpush1.msra.mxu0 0.0
    %86 = vmatprep.subr.mxu0 0.0
    %87 = vmatpush1.msra.mxu0 0.0
    %88 = vmatprep.subr.mxu0 0.0
    %89 = vmatpush1.msra.mxu0 0.0
    %90 = vmatprep.subr.mxu0 0.0
    %91 = vmatpush1.msra.mxu0 0.0
    %92 = vmatprep.subr.mxu0 0.0
    %93 = vmatpush1.msra.mxu0 0.0
    %94 = vmatprep.subr.mxu0 0.0
    %95 = vmatpush1.msra.mxu0 0.0
    %96 = vmatprep.mubr.f32.mxu0 0.0
    %97 = vmatmul.mubr.f32.gmra.mrb[0].mxu0 %v27
    %v98 = vpop.f32.mrb[0].mxu0
    %v99 = vadd.f32 %v23, %v98
    %v100 = vpop.f32.mrb[0].mxu0
    %101 = vmatprep.mubr.f32.mxu0 0.0
    %102 = vmatmul.mubr.f32.gmra.mrb[0].mxu0 %v30
    %v103 = vpop.f32.mrb[0].mxu0
    %v104 = vadd.f32 %v23, %v103
    %v105 = vpop.f32.mrb[0].mxu0
    %106 = vdwg.mxu0
    %vm107 = vcmask 261120
    %108 = vst.msk [vmem:[#allocation2] sm:$0xff] %vm107, %v99
    %109 = vst.msk [vmem:[#allocation2 + $0x8] sm:$0xff] %vm107, %v104
    // Predicated region
    $region14: #{tpu_custom_call.1} parent=1 // pred_check
      _
    $region15: #{tpu_custom_call.1} parent=1 // pred_check_branch
      %111 = sbr.rel (0) target = $region17
    $region16: #{tpu_custom_call.1} parent=1 // pred_region
      %s113 = ssub.s32 256, 256
      %114 = vsyncadd [#allocation3], %s113
      %s115 = sshll.u32 [#allocation2], 4
      %s116 = int_to_ptr.vmem [resolvable:$true] %s115
      %121 = dma.vmem_to_hbm [thread:$0]  %s116, 256, %s3, [#allocation3], 128, 128, 8
    $region17: #{tpu_custom_call.1} parent=1 // pred_fallthru
      _
    // Predicated region
    $region18: #{tpu_custom_call.1} parent=1 // pred_check
      _
    $region19: #{tpu_custom_call.1} parent=1 // pred_check_branch
      %123 = sbr.rel (0) target = $region21
    $region20: #{tpu_custom_call.1} parent=1 // pred_region
      %124 = dma.done [#allocation3], 256
    $region21: #{tpu_custom_call.1} parent=1 // pred_fallthru
      _
    %125 = vsyncpa [#allocation3], 1

</llo_original>
